<compile_context>
chip_gen: v6e
topology: v6e:2x2x1
jax: 0.10.0
libtpu: 0.0.40
codegen_flags: <defaults>
</compile_context>

<pallas_src>
import jax
import jax.numpy as jnp
from jax.experimental import pallas as pl
from jax.experimental.pallas import tpu as pltpu


def _round_up(x: int, m: int) -> int:
    return (x + m - 1) // m * m


def critic_ppo_kernel(x_ref, w1_ref, b1_ref, w2_ref, b2_ref, w3_ref, b3_ref, o_ref):
    # Layer 1: bf16 operands on the MXU, f32 accumulate; bias add + ReLU in f32.
    h = jnp.dot(x_ref[...], w1_ref[...], preferred_element_type=jnp.float32) + b1_ref[...]
    h = jnp.maximum(h, 0.0)
    # Keep the (TM, hidden) inter-layer activation in bf16: halves vld/vst
    # traffic and feeds the MXU at native rate on v6e/v7x.
    h = h.astype(jnp.bfloat16)
    # Layer 2: Linear + ReLU (f32 accumulate).
    h = jnp.dot(h, w2_ref[...], preferred_element_type=jnp.float32) + b2_ref[...]
    h = jnp.maximum(h, 0.0)
    # Output layer (hidden -> 1): VPU multiply + row reduction (XLU slot) in f32
    # instead of an N=1 MXU matmul. w3_ref is a (1, hidden) row, broadcast.
    v = jnp.sum(h * w3_ref[...].astype(jnp.float32), axis=-1, keepdims=True) + b3_ref[...]
    o_ref[...] = v.astype(o_ref.dtype)


def prepare_params(params, lane: int = 128, weight_dtype=jnp.bfloat16):
    """Zero-pad hidden widths to multiples of 128 and cast weights to bf16.

    Padded output channels have zero weight and zero bias, so after ReLU they
    are exactly 0 and contribute nothing downstream -> results unchanged.
    Biases stay f32 (added to the f32 accumulator).
    """
    W1, b1 = params["W1"], params["b1"]
    W2, b2 = params["W2"], params["b2"]
    W3, b3 = params["W3"], params["b3"]

    d_in, h1 = W1.shape
    h2 = W2.shape[1]
    h1_p = _round_up(h1, lane)
    h2_p = _round_up(h2, lane)

    W1p = jnp.zeros((d_in, h1_p), jnp.float32).at[:, :h1].set(W1)
    b1p = jnp.zeros((1, h1_p), jnp.float32).at[:, :h1].set(b1)
    W2p = jnp.zeros((h1_p, h2_p), jnp.float32).at[:h1, :h2].set(W2)
    b2p = jnp.zeros((1, h2_p), jnp.float32).at[:, :h2].set(b2)
    # Final layer (out_dim == 1) stored as a (1, hidden_padded) row.
    w3_row = jnp.zeros((1, h2_p), jnp.float32).at[:, :h2].set(W3.reshape(1, h2))
    b3p = b3.reshape(1, 1).astype(jnp.float32)
    return (W1p.astype(weight_dtype), b1p,
            W2p.astype(weight_dtype), b2p,
            w3_row.astype(weight_dtype), b3p)


def critic_ppo_forward(state, params, *, tile_m: int = 2048,
                       weight_dtype=jnp.bfloat16):
    """state: (B, state_dim) f32. params: dict of (W1,b1,W2,b2,W3,b3) f32."""
    B, d_in = state.shape
    W1p, b1p, W2p, b2p, w3_row, b3p = prepare_params(params, weight_dtype=weight_dtype)
    h1_p = W1p.shape[1]
    h2_p = W2p.shape[1]

    # bf16 state stream: halves the only per-row HBM read.
    x = state.astype(weight_dtype)

    # Batch tile: default 2048 (amortize ~0.35 us/step overhead), rounded to a
    # multiple of 8 (sublane), and capped at ceil(B/2) so that whenever B > 8
    # the grid has >=2 steps -> both TensorCores get work on v7x.
    TM = min(tile_m, max(8, _round_up(pl.cdiv(B, 2), 8)))
    grid = (pl.cdiv(B, TM),)

    w_bytes = jnp.dtype(weight_dtype).itemsize
    flops = 2 * B * (d_in * h1_p + h1_p * h2_p + h2_p)
    bytes_accessed = (
        w_bytes * (B * d_in + W1p.size + W2p.size + w3_row.size)  # bf16 streams
        + 4 * (b1p.size + b2p.size + b3p.size)                    # f32 biases
        + 4 * B                                                    # output write
    )

    const_map = lambda i: (0, 0)  # weights/biases: same block every step -> VMEM resident
    return pl.pallas_call(
        critic_ppo_kernel,
        out_shape=jax.ShapeDtypeStruct((B, 1), jnp.float32),
        grid=grid,
        in_specs=[
            pl.BlockSpec((TM, d_in), lambda i: (i, 0)),   # state: tiled, pipelined
            pl.BlockSpec(W1p.shape, const_map),
            pl.BlockSpec(b1p.shape, const_map),
            pl.BlockSpec(W2p.shape, const_map),
            pl.BlockSpec(b2p.shape, const_map),
            pl.BlockSpec(w3_row.shape, const_map),
            pl.BlockSpec(b3p.shape, const_map),
        ],
        out_specs=pl.BlockSpec((TM, 1), lambda i: (i, 0)),
        compiler_params=pltpu.CompilerParams(
            dimension_semantics=("parallel",),  # megacore sharding on v7x
        ),
        cost_estimate=pl.CostEstimate(
            flops=int(flops), bytes_accessed=int(bytes_accessed), transcendentals=0),
    )(x, W1p, b1p, W2p, b2p, w3_row, b3p)


def init_params(key, state_dim, net_dims):
    """Deterministic synthetic init; weights stored as (in_dim, out_dim)."""
    dims = [state_dim, *net_dims, 1]
    params = {}
    for i in range(len(dims) - 1):
        key, kw, kb = jax.random.split(key, 3)
        fan_in = dims[i]
        scale = 1.0 / jnp.sqrt(jnp.float32(fan_in))
        params[f"W{i + 1}"] = jax.random.uniform(
            kw, (dims[i], dims[i + 1]), jnp.float32, -scale, scale)
        params[f"b{i + 1}"] = jax.random.uniform(
            kb, (1, dims[i + 1]), jnp.float32, -scale, scale)
    return params


def reference_forward(state, params):
    h = jnp.maximum(state @ params["W1"] + params["b1"], 0.0)
    h = jnp.maximum(h @ params["W2"] + params["b2"], 0.0)
    return h @ params["W3"] + params["b3"]


if __name__ == "__main__":
    batch = 4
    state_dim = 32
    net_dims = (64, 64)

    key = jax.random.PRNGKey(0)
    key, kx = jax.random.split(key)
    state = jax.random.normal(kx, (batch, state_dim), jnp.float32)
    params = init_params(key, state_dim, net_dims)

    out = critic_ppo_forward(state, params)
    out = jax.block_until_ready(out)

    ref = reference_forward(state, params)
    assert out.shape == (batch, 1)
    # bf16 operands (f32 accumulation) -> ~1e-2 relative error vs. the f32 reference.
    assert jnp.allclose(out, ref, atol=5e-2, rtol=5e-2), "mismatch vs reference"

    print("KERNEL_OK")
</pallas_src>

<mosaic_0001>
module attributes {stable_mosaic.version = 11 : i64} {
  func.func @critic_ppo_kernel(%arg0: i32, %arg1: memref<8x32xbf16, #tpu.memory_space<vmem>>, %arg2: memref<32x128xbf16, #tpu.memory_space<vmem>>, %arg3: memref<1x128xf32, #tpu.memory_space<vmem>>, %arg4: memref<128x128xbf16, #tpu.memory_space<vmem>>, %arg5: memref<1x128xf32, #tpu.memory_space<vmem>>, %arg6: memref<1x128xbf16, #tpu.memory_space<vmem>>, %arg7: memref<1x1xf32, #tpu.memory_space<vmem>>, %arg8: memref<8x1xf32, #tpu.memory_space<vmem>>) attributes {dimension_semantics = [#tpu.dimension_semantics<parallel>], iteration_bounds = array<i64: 1>, scalar_prefetch = 0 : i64, scratch_operands = 0 : i64, tpu.core_type = #tpu.core_type<tc>, window_params = [{transform_indices = @transform_0, window_bounds = array<i64: 8, 32>}, {pipeline_mode = #tpu.pipeline_mode<synchronous>, transform_indices = @transform_1, window_bounds = array<i64: 32, 128>}, {pipeline_mode = #tpu.pipeline_mode<synchronous>, transform_indices = @transform_2, window_bounds = array<i64: 1, 128>}, {pipeline_mode = #tpu.pipeline_mode<synchronous>, transform_indices = @transform_3, window_bounds = array<i64: 128, 128>}, {pipeline_mode = #tpu.pipeline_mode<synchronous>, transform_indices = @transform_4, window_bounds = array<i64: 1, 128>}, {pipeline_mode = #tpu.pipeline_mode<synchronous>, transform_indices = @transform_5, window_bounds = array<i64: 1, 128>}, {pipeline_mode = #tpu.pipeline_mode<synchronous>, transform_indices = @transform_6, window_bounds = array<i64: 1, 1>}, {transform_indices = @transform_7, window_bounds = array<i64: 8, 1>}]} {
    %c0 = arith.constant 0 : index
    %c0_0 = arith.constant 0 : index
    %0 = vector.load %arg1[%c0, %c0_0] : memref<8x32xbf16, #tpu.memory_space<vmem>>, vector<8x32xbf16>
    %c0_1 = arith.constant 0 : index
    %c0_2 = arith.constant 0 : index
    %1 = vector.load %arg2[%c0_1, %c0_2] : memref<32x128xbf16, #tpu.memory_space<vmem>>, vector<32x128xbf16>
    %cst = arith.constant dense<0.000000e+00> : vector<8x128xf32>
    %2 = tpu.matmul %0, %1, %cst {dimension_numbers = #tpu.dot_dimension_numbers<[1], [0], [0], [1], [0, 0, 1, 1], [], []>} : vector<8x32xbf16>, vector<32x128xbf16>, vector<8x128xf32> -> vector<8x128xf32>
    %c0_3 = arith.constant 0 : index
    %c0_4 = arith.constant 0 : index
    %3 = vector.load %arg3[%c0_3, %c0_4] : memref<1x128xf32, #tpu.memory_space<vmem>>, vector<1x128xf32>
    %4 = vector.broadcast %3 : vector<1x128xf32> to vector<8x128xf32>
    %5 = arith.addf %2, %4 : vector<8x128xf32>
    %cst_5 = arith.constant 0.000000e+00 : f32
    %6 = vector.broadcast %cst_5 : f32 to vector<8x128xf32>
    %7 = arith.maximumf %5, %6 : vector<8x128xf32>
    %8 = arith.truncf %7 : vector<8x128xf32> to vector<8x128xbf16>
    %c0_6 = arith.constant 0 : index
    %c0_7 = arith.constant 0 : index
    %9 = vector.load %arg4[%c0_6, %c0_7] : memref<128x128xbf16, #tpu.memory_space<vmem>>, vector<128x128xbf16>
    %cst_8 = arith.constant dense<0.000000e+00> : vector<8x128xf32>
    %10 = tpu.matmul %8, %9, %cst_8 {dimension_numbers = #tpu.dot_dimension_numbers<[1], [0], [0], [1], [0, 0, 1, 1], [], []>} : vector<8x128xbf16>, vector<128x128xbf16>, vector<8x128xf32> -> vector<8x128xf32>
    %c0_9 = arith.constant 0 : index
    %c0_10 = arith.constant 0 : index
    %11 = vector.load %arg5[%c0_9, %c0_10] : memref<1x128xf32, #tpu.memory_space<vmem>>, vector<1x128xf32>
    %12 = vector.broadcast %11 : vector<1x128xf32> to vector<8x128xf32>
    %13 = arith.addf %10, %12 : vector<8x128xf32>
    %cst_11 = arith.constant 0.000000e+00 : f32
    %14 = vector.broadcast %cst_11 : f32 to vector<8x128xf32>
    %15 = arith.maximumf %13, %14 : vector<8x128xf32>
    %c0_12 = arith.constant 0 : index
    %c0_13 = arith.constant 0 : index
    %16 = vector.load %arg6[%c0_12, %c0_13] : memref<1x128xbf16, #tpu.memory_space<vmem>>, vector<1x128xbf16>
    %17 = arith.extf %16 : vector<1x128xbf16> to vector<1x128xf32>
    %18 = vector.broadcast %17 : vector<1x128xf32> to vector<8x128xf32>
    %19 = arith.mulf %15, %18 : vector<8x128xf32>
    %cst_14 = arith.constant dense<0.000000e+00> : vector<8xf32>
    %20 = vector.multi_reduction <add>, %19, %cst_14 [1] : vector<8x128xf32> to vector<8xf32>
    %21 = vector.shape_cast %20 : vector<8xf32> to vector<8x1xf32>
    %c0_15 = arith.constant 0 : index
    %c0_16 = arith.constant 0 : index
    %22 = vector.load %arg7[%c0_15, %c0_16] : memref<1x1xf32, #tpu.memory_space<vmem>>, vector<1x1xf32>
    %23 = vector.broadcast %22 : vector<1x1xf32> to vector<8x1xf32>
    %24 = arith.addf %21, %23 : vector<8x1xf32>
    %c0_17 = arith.constant 0 : index
    %c0_18 = arith.constant 0 : index
    %25 = vector.load %arg8[%c0_17, %c0_18] : memref<8x1xf32, #tpu.memory_space<vmem>>, vector<8x1xf32>
    tpu.vector_store %arg8[%c0_17, %c0_18], %24 {strides = array<i32>} : memref<8x1xf32, #tpu.memory_space<vmem>>, vector<8x1xf32>,
    return
  }
  func.func @transform_0(%arg0: i32) -> (i32, i32) {
    %c0_i32 = arith.constant 0 : i32
    %c0_i32_0 = arith.constant 0 : i32
    return %arg0, %c0_i32 : i32, i32
  }
  func.func @transform_1(%arg0: i32) -> (i32, i32) {
    %c0_i32 = arith.constant 0 : i32
    %c0_i32_0 = arith.constant 0 : i32
    %c0_i32_1 = arith.constant 0 : i32
    return %c0_i32, %c0_i32_0 : i32, i32
  }
  func.func @transform_2(%arg0: i32) -> (i32, i32) {
    %c0_i32 = arith.constant 0 : i32
    %c0_i32_0 = arith.constant 0 : i32
    %c0_i32_1 = arith.constant 0 : i32
    return %c0_i32, %c0_i32_0 : i32, i32
  }
  func.func @transform_3(%arg0: i32) -> (i32, i32) {
    %c0_i32 = arith.constant 0 : i32
    %c0_i32_0 = arith.constant 0 : i32
    %c0_i32_1 = arith.constant 0 : i32
    return %c0_i32, %c0_i32_0 : i32, i32
  }
  func.func @transform_4(%arg0: i32) -> (i32, i32) {
    %c0_i32 = arith.constant 0 : i32
    %c0_i32_0 = arith.constant 0 : i32
    %c0_i32_1 = arith.constant 0 : i32
    return %c0_i32, %c0_i32_0 : i32, i32
  }
  func.func @transform_5(%arg0: i32) -> (i32, i32) {
    %c0_i32 = arith.constant 0 : i32
    %c0_i32_0 = arith.constant 0 : i32
    %c0_i32_1 = arith.constant 0 : i32
    return %c0_i32, %c0_i32_0 : i32, i32
  }
  func.func @transform_6(%arg0: i32) -> (i32, i32) {
    %c0_i32 = arith.constant 0 : i32
    %c0_i32_0 = arith.constant 0 : i32
    %c0_i32_1 = arith.constant 0 : i32
    return %c0_i32, %c0_i32_0 : i32, i32
  }
  func.func @transform_7(%arg0: i32) -> (i32, i32) {
    %c0_i32 = arith.constant 0 : i32
    %c0_i32_0 = arith.constant 0 : i32
    return %arg0, %c0_i32 : i32, i32
  }
}

</mosaic_0001>

<llo_original>
// kernel: tpu_custom_call.1
$region0: #{tpu_custom_call.1}
  #allocation0 [shape = 'u32[]', space=smem, size = 0x4, offset = 0x4, fixed_abs, tag = 'smem constant byte address 0x4 - core index']
  #allocation1 [shape = 'u32[144,128]{1,0:T(1,128)}', space=vmem, size = 0x12000, scoped, tag = 'internal scratch']
  #allocation2 [shape = 'f32[1,1]{1,0:T(1,128)S(1)}', space=vmem, size = 0x200, scoped, tag = 'scoped memory for tpu_custom_call.1']
  %s0 = inlined_call_operand.vmem [shape: bf16[4,32], index: 0, kind: input, shape index: {}]
  %s1 = inlined_call_operand.hbm [shape: bf16[32,128], index: 1, kind: input, shape index: {}]
  %s2 = inlined_call_operand.vmem [shape: f32[1,128], index: 2, kind: input, shape index: {}]
  %s3 = inlined_call_operand.hbm [shape: bf16[128,128], index: 3, kind: input, shape index: {}]
  %s4 = inlined_call_operand.vmem [shape: f32[1,128], index: 4, kind: input, shape index: {}]
  %s5 = inlined_call_operand.vmem [shape: bf16[1,128], index: 5, kind: input, shape index: {}]
  %s6 = inlined_call_operand.<no memory space> [shape: f32[1,1], index: 6, kind: input, shape index: {}]
  %s7 = inlined_call_operand.vmem [shape: f32[4,1], index: 7, kind: output, shape index: {}]
  %s8 = sld [smem:[#allocation0]]
  $region76: #{tpu_custom_call.1} parent=0
    _
  %s10 = ssub.s32 1, %s8
  %s11 = scalar_select 0, %s10, %s8
  %v12 = vstv %s6
  %13 = vst [vmem:[#allocation2] sm:$0x1] %v12
  $region1: #{tpu_custom_call.1} parent=0
    #allocation3 [shape = 'u8[8192]{0}', space=vmem, size = 0x2000, scoped, tag = 'input window, operand 1, single buffered']
    #allocation4 [shape = 's32[1]{0}', space=sflag, size = 0x4, scoped, tag = 'scoped memory for tpu_custom_call.1']
    #allocation5 [shape = 'u8[32768]{0}', space=vmem, size = 0x8000, scoped, tag = 'input window, operand 3, single buffered']
    #allocation6 [shape = 's32[1]{0}', space=sflag, size = 0x4, scoped, tag = 'scoped memory for tpu_custom_call.1']
    #allocation7 [shape = 'u8[4096]{0}', space=vmem, size = 0x1000, scoped, tag = 'output window, operand 0, single buffered']
    %14 = vsyncpa [#allocation4], 0
    %15 = vsyncpa [#allocation6], 0
    // Predicated region
    $region2: #{tpu_custom_call.1} parent=1 // pred_check
      _
    $region3: #{tpu_custom_call.1} parent=1 // pred_check_branch
      %17 = sbr.rel (0) target = $region5
    $region4: #{tpu_custom_call.1} parent=1 // pred_region
      _
    $region5: #{tpu_custom_call.1} parent=1 // pred_fallthru
      _
    // Predicated region
    $region6: #{tpu_custom_call.1} parent=1 // pred_check
      _
    $region7: #{tpu_custom_call.1} parent=1 // pred_check_branch
      %19 = sbr.rel (0) target = $region9
    $region8: #{tpu_custom_call.1} parent=1 // pred_region
      %s21 = ssub.s32 256, 256
      %22 = vsyncadd [#allocation4], %s21
      %s23 = sshll.u32 [#allocation3], 4
      %s24 = int_to_ptr.vmem [resolvable:$true] %s23
      %29 = dma.hbm_to_vmem [thread:$0]  %s1, 256, %s24, [#allocation4], 64, 64, 4
    $region9: #{tpu_custom_call.1} parent=1 // pred_fallthru
      _
    // Predicated region
    $region10: #{tpu_custom_call.1} parent=1 // pred_check
      _
    $region11: #{tpu_custom_call.1} parent=1 // pred_check_branch
      %31 = sbr.rel (0) target = $region13
    $region12: #{tpu_custom_call.1} parent=1 // pred_region
      _
    $region13: #{tpu_custom_call.1} parent=1 // pred_fallthru
      _
    // Predicated region
    $region14: #{tpu_custom_call.1} parent=1 // pred_check
      _
    $region15: #{tpu_custom_call.1} parent=1 // pred_check_branch
      %33 = sbr.rel (0) target = $region17
    $region16: #{tpu_custom_call.1} parent=1 // pred_region
      %s35 = ssub.s32 1024, 1024
      %36 = vsyncadd [#allocation6], %s35
      %s37 = sshll.u32 [#allocation5], 4
      %s38 = int_to_ptr.vmem [resolvable:$true] %s37
      %43 = dma.hbm_to_vmem [thread:$0]  %s3, 1024, %s38, [#allocation6], 64, 64, 4
    $region17: #{tpu_custom_call.1} parent=1 // pred_fallthru
      _
    // Predicated region
    $region18: #{tpu_custom_call.1} parent=1 // pred_check
      _
    $region19: #{tpu_custom_call.1} parent=1 // pred_check_branch
      %45 = sbr.rel (0) target = $region21
    $region20: #{tpu_custom_call.1} parent=1 // pred_region
      _
    $region21: #{tpu_custom_call.1} parent=1 // pred_fallthru
      _
    // Predicated region
    $region22: #{tpu_custom_call.1} parent=1 // pred_check
      _
    $region23: #{tpu_custom_call.1} parent=1 // pred_check_branch
      %47 = sbr.rel (0) target = $region25
    $region24: #{tpu_custom_call.1} parent=1 // pred_region
      _
    $region25: #{tpu_custom_call.1} parent=1 // pred_fallthru
      _
    // Predicated region
    $region26: #{tpu_custom_call.1} parent=1 // pred_check
      _
    $region27: #{tpu_custom_call.1} parent=1 // pred_check_branch
      %49 = sbr.rel (0) target = $region29
    $region28: #{tpu_custom_call.1} parent=1 // pred_region
      _
    $region29: #{tpu_custom_call.1} parent=1 // pred_fallthru
      _
    // Predicated region
    $region30: #{tpu_custom_call.1} parent=1 // pred_check
      _
    $region31: #{tpu_custom_call.1} parent=1 // pred_check_branch
      %51 = sbr.rel (0) target = $region33
    $region32: #{tpu_custom_call.1} parent=1 // pred_region
      %52 = dma.done [#allocation4], 256
    $region33: #{tpu_custom_call.1} parent=1 // pred_fallthru
      _
    // Predicated region
    $region34: #{tpu_custom_call.1} parent=1 // pred_check
      _
    $region35: #{tpu_custom_call.1} parent=1 // pred_check_branch
      %54 = sbr.rel (0) target = $region37
    $region36: #{tpu_custom_call.1} parent=1 // pred_region
      %55 = dma.done [#allocation6], 1024
    $region37: #{tpu_custom_call.1} parent=1 // pred_fallthru
      _
    %v57 = vld [vmem:[%s0] sm:$0x3]
    %v58 = vld [vmem:[%s0 + $0x2] sm:$0x3]
    %v59 = vld [vmem:[#allocation3] sm:$0xf]
    %v60 = vld [vmem:[#allocation3 + $0x4] sm:$0xf]
    %v61 = vld [vmem:[#allocation3 + $0x8] sm:$0xf]
    %v62 = vld [vmem:[#allocation3 + $0xc] sm:$0xf]
    %v63 = vld [vmem:[%s2] sm:$0x1]
    %v65 = vlaneseq
    %v66 = vshrl.u32 %v65, 7
    %v67 = vsub.s32 0, %v66
    %v68 = vrot.slane %v63, %v67
    %v72 = vcombine.low %v57, %v58
    %v74 = vunpack.c.l.s4 1983009808
    %v75 = vunpack.c.0.s8 %v74
    %v76 = vlaneseq
    %v77 = vshrl.u32 %v76, 7
    %v78 = vsub.s32 %v75, %v77
    %v79 = vrot.slane %v72, %v78
    %v84 = vunpack.c.l.b16 %v59
    %v85 = vunpack.c.l.b16 %v60
    %v86 = vunpack.c.l.b16 %v61
    %v87 = vunpack.c.l.b16 %v62
    %v88 = vpack.c.b16 %v85, %v84
    %v89 = vpack.c.b16 %v87, %v86
    %vm92 = vcmask 261120
    %v94 = vsel %vm92, %v79, 0
    %96 = vmatprep.subr.bf16.mxu0 0
    %97 = vmatpush1.bf16.msra.mxu0 0
    %98 = vmatprep.subr.bf16.mxu0 0
    %99 = vmatpush1.bf16.msra.mxu0 0
    %100 = vmatprep.subr.bf16.mxu0 0
    %101 = vmatpush1.bf16.msra.mxu0 0
    %102 = vmatprep.subr.bf16.mxu0 0
    %103 = vmatpush1.bf16.msra.mxu0 0
    %104 = vmatprep.subr.bf16.mxu0 0
    %105 = vmatpush1.bf16.msra.mxu0 0
    %106 = vmatprep.subr.bf16.mxu0 0
    %107 = vmatpush1.bf16.msra.mxu0 0
    %108 = vmatprep.subr.bf16.mxu0 0
    %109 = vmatpush1.bf16.msra.mxu0 %v89
    %110 = vmatprep.subr.bf16.mxu0 0
    %111 = vmatpush1.bf16.msra.mxu0 %v88
    %112 = vmatprep.subr.bf16.mxu0 0
    %113 = vmatpush2.bf16.msra.mxu0 0
    %114 = vmatprep.subr.bf16.mxu0 0
    %115 = vmatpush2.bf16.msra.mxu0 0
    %116 = vmatprep.subr.bf16.mxu0 0
    %117 = vmatpush2.bf16.msra.mxu0 0
    %118 = vmatprep.subr.bf16.mxu0 0
    %119 = vmatpush2.bf16.msra.mxu0 0
    %120 = vmatprep.subr.bf16.mxu0 0
    %121 = vmatpush2.bf16.msra.mxu0 0
    %122 = vmatprep.subr.bf16.mxu0 0
    %123 = vmatpush2.bf16.msra.mxu0 0
    %124 = vmatprep.subr.bf16.mxu0 0
    %125 = vmatpush2.bf16.msra.mxu0 0
    %126 = vmatprep.subr.bf16.mxu0 0
    %127 = vmatpush2.bf16.msra.mxu0 0
    %128 = vmatprep.mubr.bf16.mxu0 0
    %129 = vmatmul.mubr.bf16.gmra.mxu0 %v94
    %v130 = vpop.f32.mrf.mxu0
    %v131 = vadd.f32 %v68, %v130
    %v132 = vpop.f32.mrf.mxu0
    %v133 = vpop.f32.mrf.mxu0
    %v134 = vpop.f32.mrf.mxu0
    %135 = vdwg.mxu0
    %v136 = vmax.f32 %v131, 0.0
    %v137 = vpack.c.bf16 %v136, %v136
    %v138 = vld [vmem:[#allocation5] sm:$0xf]
    %v139 = vld [vmem:[#allocation5 + $0x4] sm:$0xf]
    %v140 = vld [vmem:[#allocation5 + $0x8] sm:$0xf]
    %v141 = vld [vmem:[#allocation5 + $0xc] sm:$0xf]
    %v142 = vld [vmem:[#allocation5 + $0x10] sm:$0xf]
    %v143 = vld [vmem:[#allocation5 + $0x14] sm:$0xf]
    %v144 = vld [vmem:[#allocation5 + $0x18] sm:$0xf]
    %v145 = vld [vmem:[#allocation5 + $0x1c] sm:$0xf]
    %v146 = vld [vmem:[#allocation5 + $0x20] sm:$0xf]
    %v147 = vld [vmem:[#allocation5 + $0x24] sm:$0xf]
    %v148 = vld [vmem:[#allocation5 + $0x28] sm:$0xf]
    %v149 = vld [vmem:[#allocation5 + $0x2c] sm:$0xf]
    %v150 = vld [vmem:[#allocation5 + $0x30] sm:$0xf]
    %v151 = vld [vmem:[#allocation5 + $0x34] sm:$0xf]
    %v152 = vld [vmem:[#allocation5 + $0x38] sm:$0xf]
    %v153 = vld [vmem:[#allocation5 + $0x3c] sm:$0xf]
    %v154 = vld [vmem:[%s4] sm:$0x1]
    %v156 = vlaneseq
    %v157 = vshrl.u32 %v156, 7
    %v158 = vsub.s32 0, %v157
    %v159 = vrot.slane %v154, %v158
    %v177 = vunpack.c.l.b16 %v138
    %v178 = vunpack.c.l.b16 %v139
    %v179 = vunpack.c.l.b16 %v140
    %v180 = vunpack.c.l.b16 %v141
    %v181 = vunpack.c.l.b16 %v142
    %v182 = vunpack.c.l.b16 %v143
    %v183 = vunpack.c.l.b16 %v144
    %v184 = vunpack.c.l.b16 %v145
    %v185 = vunpack.c.l.b16 %v146
    %v186 = vunpack.c.l.b16 %v147
    %v187 = vunpack.c.l.b16 %v148
    %v188 = vunpack.c.l.b16 %v149
    %v189 = vunpack.c.l.b16 %v150
    %v190 = vunpack.c.l.b16 %v151
    %v191 = vunpack.c.l.b16 %v152
    %v192 = vunpack.c.l.b16 %v153
    %v193 = vpack.c.b16 %v178, %v177
    %v194 = vpack.c.b16 %v180, %v179
    %v195 = vpack.c.b16 %v182, %v181
    %v196 = vpack.c.b16 %v184, %v183
    %v197 = vpack.c.b16 %v186, %v185
    %v198 = vpack.c.b16 %v188, %v187
    %v199 = vpack.c.b16 %v190, %v189
    %v200 = vpack.c.b16 %v192, %v191
    %209 = vmatprep.subr.bf16.mxu0 0
    %210 = vmatpush1.bf16.msra.mxu0 %v200
    %211 = vmatprep.subr.bf16.mxu0 0
    %212 = vmatpush1.bf16.msra.mxu0 %v199
    %213 = vmatprep.subr.bf16.mxu0 0
    %214 = vmatpush1.bf16.msra.mxu0 %v198
    %215 = vmatprep.subr.bf16.mxu0 0
    %216 = vmatpush1.bf16.msra.mxu0 %v197
    %217 = vmatprep.subr.bf16.mxu0 0
    %218 = vmatpush1.bf16.msra.mxu0 %v196
    %219 = vmatprep.subr.bf16.mxu0 0
    %220 = vmatpush1.bf16.msra.mxu0 %v195
    %221 = vmatprep.subr.bf16.mxu0 0
    %222 = vmatpush1.bf16.msra.mxu0 %v194
    %223 = vmatprep.subr.bf16.mxu0 0
    %224 = vmatpush1.bf16.msra.mxu0 %v193
    %225 = vmatprep.subr.bf16.mxu0 0
    %226 = vmatpush2.bf16.msra.mxu0 0
    %227 = vmatprep.subr.bf16.mxu0 0
    %228 = vmatpush2.bf16.msra.mxu0 0
    %229 = vmatprep.subr.bf16.mxu0 0
    %230 = vmatpush2.bf16.msra.mxu0 0
    %231 = vmatprep.subr.bf16.mxu0 0
    %232 = vmatpush2.bf16.msra.mxu0 0
    %233 = vmatprep.subr.bf16.mxu0 0
    %234 = vmatpush2.bf16.msra.mxu0 0
    %235 = vmatprep.subr.bf16.mxu0 0
    %236 = vmatpush2.bf16.msra.mxu0 0
    %237 = vmatprep.subr.bf16.mxu0 0
    %238 = vmatpush2.bf16.msra.mxu0 0
    %239 = vmatprep.subr.bf16.mxu0 0
    %240 = vmatpush2.bf16.msra.mxu0 0
    %241 = vmatprep.mubr.bf16.mxu0 0
    %242 = vmatmul.mubr.bf16.gmra.mxu0 %v137
    %v243 = vpop.f32.mrf.mxu0
    %v244 = vadd.f32 %v159, %v243
    %v245 = vpop.f32.mrf.mxu0
    %v246 = vpop.f32.mrf.mxu0
    %v247 = vpop.f32.mrf.mxu0
    %248 = vdwg.mxu0
    %v249 = vmax.f32 %v244, 0.0
    %v250 = vld [vmem:[%s5] sm:$0x1]
    %v251 = vunpack.c.l.bf16 %v250
    %v252 = vlaneseq
    %v253 = vshrl.u32 %v252, 7
    %v254 = vsub.s32 0, %v253
    %v255 = vrot.slane %v251, %v254
    %v256 = vmul.f32 %v249, %v255
    %257 = vadd.xlane.f32.xlu0 %v256
    %v258 = vpop.xlane.xlu0 %257
    %v259 = vld [vmem:[#allocation2] sm:$0x1]
    %v261 = vlaneseq
    %v262 = vshrl.u32 %v261, 7
    %v263 = vsub.s32 0, %v262
    %v264 = vrot.slane %v259, %v263
    %v266 = vadd.f32 %v258, %v264
    %vm267 = vcmask 7168
    %268 = vst.msk [vmem:[#allocation7] sm:$0xff] %vm267, %v266
    // Predicated region
    $region38: #{tpu_custom_call.1} parent=1 // pred_check
      _
    $region39: #{tpu_custom_call.1} parent=1 // pred_check_branch
      %270 = sbr.rel (0) target = $region41
    $region40: #{tpu_custom_call.1} parent=1 // pred_region
      // Predicated region
      $region42: #{tpu_custom_call.1} parent=40 // pred_check
        _
      $region43: #{tpu_custom_call.1} parent=40 // pred_check_branch
        %272 = sbr.rel (0) target = $region45
      $region44: #{tpu_custom_call.1} parent=40 // pred_region
        // Predicated region
        $region46: #{tpu_custom_call.1} parent=44 // pred_check
          _
        $region47: #{tpu_custom_call.1} parent=44 // pred_check_branch
          %274 = sbr.rel target = $region49
        $region48: #{tpu_custom_call.1} parent=44 // pred_region
          // Predicated region
          $region61: #{tpu_custom_call.1} parent=48 // pred_check
            _
          $region62: #{tpu_custom_call.1} parent=48 // pred_check_branch
            %290 = sbr.rel (0) target = $region64
          $region63: #{tpu_custom_call.1} parent=48 // pred_region
            %s292 = ssub.s32 16, 1
            loop: start=0, step=1, limit=1
            $region65: #{tpu_custom_call.1} parent=63 // loop_pre_header
              _
            $region66: #{tpu_custom_call.1} parent=63 // loop_header
              %s294 = sphi 0, %s298
              %p295 = scmp.ge.s32.totalorder %s294, 1
              %s299 = sphi [#allocation7], [#allocation7]
              %s300 = sphi %s7, %s7
            $region67: #{tpu_custom_call.1} parent=63 // loop_header_branch
              %297 = sbr.rel (%p295) target = $region71
            $region68: #{tpu_custom_call.1} parent=63 // loop_body
              %v301 = vld [vmem:[%s299] sm:%s292]
              %302 = vst [vmem:[%s300] sm:%s292] %v301
            $region69: #{tpu_custom_call.1} parent=63 // loop_footer
              %s298 = sadd.s32 1, %s294
            $region70: #{tpu_custom_call.1} parent=63 // loop_footer_branch
              %293 = sbr.rel target = $region66
            $region71: #{tpu_custom_call.1} parent=63 // loop_exit
              _
          $region64: #{tpu_custom_call.1} parent=48 // pred_fallthru
            _
        $region49: #{tpu_custom_call.1} parent=44 // pred_fallthru
          _
        // Predicated region
        $region50: #{tpu_custom_call.1} parent=44 // pred_check
          _
        $region51: #{tpu_custom_call.1} parent=44 // pred_check_branch
          %276 = sbr.rel (0) target = $region53
        $region52: #{tpu_custom_call.1} parent=44 // pred_region
          %s278 = ssub.s32 16, 1
          loop: start=0, step=1, limit=1
          $region54: #{tpu_custom_call.1} parent=52 // loop_pre_header
            _
          $region55: #{tpu_custom_call.1} parent=52 // loop_header
            %s280 = sphi 0, %s284
            %p281 = scmp.ge.s32.totalorder %s280, 1
            %s285 = sphi [#allocation7], [#allocation7]
            %s286 = sphi %s7, %s7
          $region56: #{tpu_custom_call.1} parent=52 // loop_header_branch
            %283 = sbr.rel (%p281) target = $region60
          $region57: #{tpu_custom_call.1} parent=52 // loop_body
            %v287 = vld [vmem:[%s285] sm:%s278]
            %288 = vst [vmem:[%s286] sm:%s278] %v287
          $region58: #{tpu_custom_call.1} parent=52 // loop_footer
            %s284 = sadd.s32 1, %s280
          $region59: #{tpu_custom_call.1} parent=52 // loop_footer_branch
            %279 = sbr.rel target = $region55
          $region60: #{tpu_custom_call.1} parent=52 // loop_exit
            _
        $region53: #{tpu_custom_call.1} parent=44 // pred_fallthru
          _
      $region45: #{tpu_custom_call.1} parent=40 // pred_fallthru
        _
      %303 = vnop
    $region41: #{tpu_custom_call.1} parent=1 // pred_fallthru
      _
    // Predicated region
    $region72: #{tpu_custom_call.1} parent=1 // pred_check
      _
    $region73: #{tpu_custom_call.1} parent=1 // pred_check_branch
      %305 = sbr.rel (0) target = $region75
    $region74: #{tpu_custom_call.1} parent=1 // pred_region
      _
    $region75: #{tpu_custom_call.1} parent=1 // pred_fallthru
      _
    %306 = vsyncpa [#allocation4], 1
    %307 = vsyncpa [#allocation6], 1

</llo_original>
